<compile_context>
chip_gen: v6e
topology: v6e:2x2x1
jax: 0.10.0
libtpu: 0.0.40
codegen_flags: <defaults>
</compile_context>

<pallas_src>
import math
import numpy as np
import jax
import jax.numpy as jnp
from jax.experimental import pallas as pl
from jax.experimental.pallas import tpu as pltpu

# ---- small, module-consistent shapes -------------------------------------
BATCH = 2
CHANNEL_DIM = 4          # channel_dim
RESOLUTION = 16          # cfg.input.resolution
W_DIM = 32               # w_dim
MOTION_W_DIM = 8         # motion_w_dim
HW = RESOLUTION * RESOLUTION
C_TOTAL = CHANNEL_DIM + MOTION_W_DIM + CHANNEL_DIM   # const + motion_w + fc(w) = 16

WEIGHT_GAIN = 1.0 / math.sqrt(W_DIM)   # FullyConnectedLayer.weight_gain (lr_multiplier=1)
LRELU_SLOPE = 0.2                      # bias_act 'lrelu' alpha
LRELU_GAIN = math.sqrt(2.0)            # bias_act 'lrelu' def_gain

# Packed static-parameter buffer layout ([PACKED_ROWS, HW] f32, one DMA):
#   rows [0, 16)           : const template (rows 0-3 = const, rows 4-15 = 0)
#   rows [16, 20), cols<32 : FC weight * weight_gain   [4, 32]
#   row 20,        cols<4  : FC bias                   [4]
ROW_FCW = C_TOTAL
ROW_FCB = C_TOTAL + CHANNEL_DIM
PACKED_ROWS = 24          # pad to a multiple of 8 sublanes


def _fc_lrelu_f32(w, fcw_scaled, fcb):
    """FullyConnectedLayer(w_dim->channel_dim, activation='lrelu'), exact f32.

    Done on VPU/XLU (broadcast-multiply + lane reduction) instead of the MXU:
    a 2x32x4 contraction gains nothing from the systolic array and the VPU
    path avoids the default bf16-pass matmul truncation.
    """
    # w: [B, W_DIM], fcw_scaled: [C, W_DIM], fcb: [1, C]
    prods = w[:, None, :] * fcw_scaled[None, :, :]        # [B, C, W_DIM]
    y = jnp.sum(prods, axis=-1) + fcb                     # [B, C]
    return jnp.where(y >= 0.0, y, LRELU_SLOPE * y) * LRELU_GAIN


def build_gen_input_block(const_tmpl, motion_w, w, fcw_scaled, fcb):
    """Fusion-friendly body: returns the [B, C_TOTAL, HW] block in f32.

    A consuming Pallas kernel can call this directly on its VMEM-loaded
    operands instead of re-reading a materialized [B, 16, H, W] tensor.
    """
    B = motion_w.shape[0]
    y = _fc_lrelu_f32(w, fcw_scaled, fcb)                               # [B, C]
    # Per-batch channel vector: cols 0-3 = 0 (const lives in the template),
    # cols 4-11 = motion_w, cols 12-15 = y.  Tiny single-vreg concat.
    chan = jnp.concatenate(
        [jnp.zeros((B, CHANNEL_DIM), jnp.float32), motion_w, y], axis=-1)  # [B, 16]
    # One lane-broadcast + one full-tile VPU add (no sublane-axis concat).
    return chan[:, :, None] + const_tmpl[None, :, :]                    # [B, 16, HW]


def gen_input_kernel(params_ref, mw_ref, w_ref, out_ref):
    # params_ref: [PACKED_ROWS, HW]  packed static params (see layout above)
    # mw_ref:     [B, MOTION_W_DIM]  motion_w
    # w_ref:      [B, W_DIM]         latent w
    # out_ref:    [B, C_TOTAL, HW]
    const_tmpl = params_ref[0:C_TOTAL, :]                          # [16, HW]
    fcw = params_ref[ROW_FCW:ROW_FCW + CHANNEL_DIM, 0:W_DIM]       # [4, 32]
    fcb = params_ref[ROW_FCB:ROW_FCB + 1, 0:CHANNEL_DIM]           # [1, 4]
    block = build_gen_input_block(const_tmpl, mw_ref[...], w_ref[...], fcw, fcb)
    out_ref[...] = block.astype(out_ref.dtype)   # single full-tile unmasked store


def prepare_gen_input_params(const_param, fc_weight, fc_bias):
    """One-time parameter prep (init time, NOT per forward call): pack every
    static parameter into a single pre-padded VMEM operand (one prologue DMA)."""
    const2d = const_param.reshape(CHANNEL_DIM, HW).astype(jnp.float32)
    packed = jnp.zeros((PACKED_ROWS, HW), jnp.float32)
    packed = packed.at[0:CHANNEL_DIM, :].set(const2d)                       # const template
    packed = packed.at[ROW_FCW:ROW_FCW + CHANNEL_DIM, 0:W_DIM].set(
        fc_weight.astype(jnp.float32) * WEIGHT_GAIN)                        # weight_gain folded
    packed = packed.at[ROW_FCB, 0:CHANNEL_DIM].set(fc_bias.astype(jnp.float32))
    return packed


def gen_input_forward(packed_params, motion_w, w, out_dtype=jnp.float32):
    """GenInput('temporal').forward(batch_size, w=w, t=t, motion_w=motion_w) -> NCHW."""
    vmem = pltpu.MemorySpace.VMEM
    out = pl.pallas_call(
        gen_input_kernel,
        out_shape=jax.ShapeDtypeStruct((BATCH, C_TOTAL, HW), out_dtype),
        in_specs=[
            pl.BlockSpec(memory_space=vmem),   # packed static params
            pl.BlockSpec(memory_space=vmem),   # motion_w
            pl.BlockSpec(memory_space=vmem),   # w
        ],
        out_specs=pl.BlockSpec(memory_space=vmem),
    )(packed_params, motion_w, w)
    return out.reshape(BATCH, C_TOTAL, RESOLUTION, RESOLUTION)


def gen_input_reference(const_param, fc_weight, fc_bias, motion_w, w):
    """Pure-JAX reference (mirrors the PyTorch forward; exact-f32 contraction)."""
    const_part = jnp.broadcast_to(
        const_param[None], (BATCH, CHANNEL_DIM, RESOLUTION, RESOLUTION))
    mw_part = jnp.broadcast_to(
        motion_w[:, :, None, None], (BATCH, MOTION_W_DIM, RESOLUTION, RESOLUTION))
    y = jnp.sum(w[:, None, :] * (fc_weight * WEIGHT_GAIN)[None, :, :], axis=-1)
    y = y + fc_bias[None, :]
    y = jnp.where(y >= 0.0, y, LRELU_SLOPE * y) * LRELU_GAIN
    var_part = jnp.broadcast_to(
        y[:, :, None, None], (BATCH, CHANNEL_DIM, RESOLUTION, RESOLUTION))
    return jnp.concatenate([const_part, mw_part, var_part], axis=1)


if __name__ == "__main__":
    key = jax.random.PRNGKey(0)
    k_const, k_fcw, k_fcb, k_mw, k_w = jax.random.split(key, 5)

    # deterministic parameter init (shapes per TemporalInput.__init__)
    const_param = jax.random.normal(
        k_const, (CHANNEL_DIM, RESOLUTION, RESOLUTION), jnp.float32)   # nn.Parameter(randn(1,C,R,R)), batch dim squeezed
    fc_weight = jax.random.normal(k_fcw, (CHANNEL_DIM, W_DIM), jnp.float32)   # randn([out, in])
    fc_bias = jax.random.normal(k_fcb, (CHANNEL_DIM,), jnp.float32) * 0.1     # bias path exercised

    # deterministic example inputs
    motion_w = jax.random.normal(k_mw, (BATCH, MOTION_W_DIM), jnp.float32)
    w = jax.random.normal(k_w, (BATCH, W_DIM), jnp.float32)
    t = jnp.arange(BATCH, dtype=jnp.float32)  # t accepted but unused by TemporalInput.forward

    # init-time parameter prep (pack const template + scaled FC weight + bias into one operand)
    packed_params = prepare_gen_input_params(const_param, fc_weight, fc_bias)
    packed_params = jax.block_until_ready(packed_params)

    out = gen_input_forward(packed_params, motion_w, w)
    out = jax.block_until_ready(out)

    ref = gen_input_reference(const_param, fc_weight, fc_bias, motion_w, w)
    assert out.shape == (BATCH, C_TOTAL, RESOLUTION, RESOLUTION), out.shape
    np.testing.assert_allclose(np.asarray(out), np.asarray(ref), rtol=1e-5, atol=1e-5)

    print("KERNEL_OK")
</pallas_src>

<mosaic_0001>
module attributes {stable_mosaic.version = 11 : i64} {
  func.func @gen_input_kernel(%arg0: memref<24x256xf32, #tpu.memory_space<vmem>>, %arg1: memref<2x8xf32, #tpu.memory_space<vmem>>, %arg2: memref<2x32xf32, #tpu.memory_space<vmem>>, %arg3: memref<2x16x256xf32, #tpu.memory_space<vmem>>) attributes {dimension_semantics = [], scalar_prefetch = 0 : i64, scratch_operands = 0 : i64, tpu.core_type = #tpu.core_type<tc>} {
    %c0 = arith.constant 0 : index
    %c0_0 = arith.constant 0 : index
    %0 = vector.load %arg0[%c0, %c0_0] : memref<24x256xf32, #tpu.memory_space<vmem>>, vector<16x256xf32>
    %c16 = arith.constant 16 : index
    %c0_1 = arith.constant 0 : index
    %1 = vector.load %arg0[%c16, %c0_1] : memref<24x256xf32, #tpu.memory_space<vmem>>, vector<4x32xf32>
    %c20 = arith.constant 20 : index
    %c0_2 = arith.constant 0 : index
    %2 = vector.load %arg0[%c20, %c0_2] : memref<24x256xf32, #tpu.memory_space<vmem>>, vector<1x4xf32>
    %c0_3 = arith.constant 0 : index
    %c0_4 = arith.constant 0 : index
    %3 = vector.load %arg1[%c0_3, %c0_4] : memref<2x8xf32, #tpu.memory_space<vmem>>, vector<2x8xf32>
    %c0_5 = arith.constant 0 : index
    %c0_6 = arith.constant 0 : index
    %4 = vector.load %arg2[%c0_5, %c0_6] : memref<2x32xf32, #tpu.memory_space<vmem>>, vector<2x32xf32>
    %5 = vector.shape_cast %4 : vector<2x32xf32> to vector<2x1x32xf32>
    %6 = vector.shape_cast %1 : vector<4x32xf32> to vector<1x4x32xf32>
    %7 = vector.broadcast %5 : vector<2x1x32xf32> to vector<2x4x32xf32>
    %8 = vector.broadcast %6 : vector<1x4x32xf32> to vector<2x4x32xf32>
    %9 = arith.mulf %7, %8 : vector<2x4x32xf32>
    %cst = arith.constant dense<0.000000e+00> : vector<2x4xf32>
    %10 = vector.multi_reduction <add>, %9, %cst [2] : vector<2x4x32xf32> to vector<2x4xf32>
    %11 = vector.broadcast %2 : vector<1x4xf32> to vector<2x4xf32>
    %12 = arith.addf %10, %11 : vector<2x4xf32>
    %cst_7 = arith.constant 0.000000e+00 : f32
    %13 = vector.broadcast %cst_7 : f32 to vector<2x4xf32>
    %14 = arith.cmpf oge, %12, %13 : vector<2x4xf32>
    %cst_8 = arith.constant 2.000000e-01 : f32
    %15 = vector.broadcast %cst_8 : f32 to vector<2x4xf32>
    %16 = arith.mulf %15, %12 : vector<2x4xf32>
    %17 = arith.select %14, %12, %16 : vector<2x4xi1>, vector<2x4xf32>
    %cst_9 = arith.constant 1.41421354 : f32
    %18 = vector.broadcast %cst_9 : f32 to vector<2x4xf32>
    %19 = arith.mulf %17, %18 : vector<2x4xf32>
    %cst_10 = arith.constant 0.000000e+00 : f32
    %20 = vector.broadcast %cst_10 : f32 to vector<2x4xf32>
    %21 = tpu.concatenate %20, %3, %19 in 1 : vector<2x4xf32>, vector<2x8xf32>, vector<2x4xf32> -> vector<2x16xf32>
    %22 = vector.shape_cast %21 : vector<2x16xf32> to vector<2x16x1xf32>
    %23 = vector.shape_cast %0 : vector<16x256xf32> to vector<1x16x256xf32>
    %24 = vector.broadcast %22 : vector<2x16x1xf32> to vector<2x16x256xf32>
    %25 = vector.broadcast %23 : vector<1x16x256xf32> to vector<2x16x256xf32>
    %26 = arith.addf %24, %25 : vector<2x16x256xf32>
    %c0_11 = arith.constant 0 : index
    %c0_12 = arith.constant 0 : index
    %c0_13 = arith.constant 0 : index
    %27 = vector.load %arg3[%c0_11, %c0_12, %c0_13] : memref<2x16x256xf32, #tpu.memory_space<vmem>>, vector<2x16x256xf32>
    tpu.vector_store %arg3[%c0_11, %c0_12, %c0_13], %26 {strides = array<i32>} : memref<2x16x256xf32, #tpu.memory_space<vmem>>, vector<2x16x256xf32>,
    return
  }
}

</mosaic_0001>

<llo_original>
// kernel: tpu_custom_call.1
$region0: #{tpu_custom_call.1}
  #allocation0 [shape = 'u32[]', space=smem, size = 0x4, offset = 0x4, fixed_abs, tag = 'smem constant byte address 0x4 - core index']
  #allocation1 [shape = 'u32[144,128]{1,0:T(1,128)}', space=vmem, size = 0x12000, scoped, tag = 'internal scratch']
  %s0 = inlined_call_operand.hbm [shape: f32[24,256], index: 0, kind: input, shape index: {}]
  %s1 = inlined_call_operand.hbm [shape: f32[2,8], index: 1, kind: input, shape index: {}]
  %s2 = inlined_call_operand.vmem [shape: f32[2,32], index: 2, kind: input, shape index: {}]
  %s3 = inlined_call_operand.hbm [shape: f32[2,16,256], index: 3, kind: output, shape index: {}]
  %s4 = sld [smem:[#allocation0]]
  $region30: #{tpu_custom_call.1} parent=0
    _
  %s6 = ssub.s32 1, %s4
  %s7 = scalar_select 0, %s6, %s4
  $region1: #{tpu_custom_call.1} parent=0
    #allocation2 [shape = 'u8[24576]{0}', space=vmem, size = 0x6000, scoped, tag = 'input window, operand 0, single buffered']
    #allocation3 [shape = 's32[1]{0}', space=sflag, size = 0x4, scoped, tag = 'scoped memory for tpu_custom_call.1']
    #allocation4 [shape = 's32[1]{0}', space=sflag, size = 0x4, scoped, tag = 'scoped memory for tpu_custom_call.1']
    #allocation5 [shape = 'u8[1024]{0}', space=vmem, size = 0x400, scoped, tag = 'input window, operand 1, single buffered']
    #allocation6 [shape = 's32[1]{0}', space=sflag, size = 0x4, scoped, tag = 'scoped memory for tpu_custom_call.1']
    #allocation7 [shape = 'u8[32768]{0}', space=vmem, size = 0x8000, scoped, tag = 'output window, operand 0, single buffered']
    %8 = vsyncpa [#allocation3], 0
    %9 = vsyncpa [#allocation6], 0
    %10 = vsyncpa [#allocation4], 0
    // Predicated region
    $region2: #{tpu_custom_call.1} parent=1 // pred_check
      _
    $region3: #{tpu_custom_call.1} parent=1 // pred_check_branch
      %12 = sbr.rel (0) target = $region5
    $region4: #{tpu_custom_call.1} parent=1 // pred_region
      %s14 = ssub.s32 768, 768
      %15 = vsyncadd [#allocation3], %s14
      %s16 = sshll.u32 [#allocation2], 4
      %s17 = int_to_ptr.vmem [resolvable:$true] %s16
      %22 = dma.hbm_to_vmem [thread:$0]  %s0, 768, %s17, [#allocation3], 256, 256, 16
    $region5: #{tpu_custom_call.1} parent=1 // pred_fallthru
      _
    // Predicated region
    $region6: #{tpu_custom_call.1} parent=1 // pred_check
      _
    $region7: #{tpu_custom_call.1} parent=1 // pred_check_branch
      %24 = sbr.rel (0) target = $region9
    $region8: #{tpu_custom_call.1} parent=1 // pred_region
      %s26 = ssub.s32 32, 32
      %27 = vsyncadd [#allocation6], %s26
      %s29 = sshll.u32 [#allocation5], 4
      %s30 = int_to_ptr.vmem [resolvable:$true] %s29
      %32 = dma.hbm_to_vmem [thread:$0]  %s1, 32, %s30, [#allocation6]
    $region9: #{tpu_custom_call.1} parent=1 // pred_fallthru
      _
    // Predicated region
    $region10: #{tpu_custom_call.1} parent=1 // pred_check
      _
    $region11: #{tpu_custom_call.1} parent=1 // pred_check_branch
      %34 = sbr.rel (0) target = $region13
    $region12: #{tpu_custom_call.1} parent=1 // pred_region
      _
    $region13: #{tpu_custom_call.1} parent=1 // pred_fallthru
      _
    // Predicated region
    $region14: #{tpu_custom_call.1} parent=1 // pred_check
      _
    $region15: #{tpu_custom_call.1} parent=1 // pred_check_branch
      %36 = sbr.rel (0) target = $region17
    $region16: #{tpu_custom_call.1} parent=1 // pred_region
      %37 = dma.done [#allocation3], 768
    $region17: #{tpu_custom_call.1} parent=1 // pred_fallthru
      _
    // Predicated region
    $region18: #{tpu_custom_call.1} parent=1 // pred_check
      _
    $region19: #{tpu_custom_call.1} parent=1 // pred_check_branch
      %39 = sbr.rel (0) target = $region21
    $region20: #{tpu_custom_call.1} parent=1 // pred_region
      %40 = dma.done [#allocation6], 32
    $region21: #{tpu_custom_call.1} parent=1 // pred_fallthru
      _
    %v41 = vld [vmem:[#allocation2] sm:$0xff]
    %v42 = vld [vmem:[#allocation2 + $0x8] sm:$0xff]
    %v43 = vld [vmem:[#allocation2 + $0x10] sm:$0xff]
    %v44 = vld [vmem:[#allocation2 + $0x18] sm:$0xff]
    %v45 = vld [vmem:[#allocation2 + $0x20] sm:$0xf]
    %v46 = vld [vmem:[#allocation2 + $0x24] ss:$0 sm:$0xff]
    %v47 = vld [vmem:[#allocation5] sm:$0x3]
    %v48 = vld [vmem:[%s2] sm:$0x3]
    %v51 = vunpack.c.l.s4 1966171168
    %v52 = vunpack.c.0.s8 %v51
    %v53 = vlaneseq
    %v54 = vshrl.u32 %v53, 7
    %v55 = vsub.s32 %v52, %v54
    %v56 = vrot.slane %v48, %v55
    %v57 = vcombine.high %v56, %v56
    %v59 = vunpack.c.l.s4 1966171168
    %v60 = vunpack.c.0.s8 %v59
    %v61 = vlaneseq
    %v62 = vshrl.u32 %v61, 7
    %v63 = vsub.s32 %v60, %v62
    %v64 = vrot.slane %v56, %v63
    %v66 = vunpack.c.l.s4 1966171168
    %v67 = vunpack.c.0.s8 %v66
    %v68 = vlaneseq
    %v69 = vshrl.u32 %v68, 7
    %v70 = vsub.s32 %v67, %v69
    %v71 = vrot.slane %v57, %v70
    %v72 = vlaneseq
    %v73 = vshrl.u32 %v72, 7
    %v74 = vsub.s32 0, %v73
    %v75 = vrot.slane %v64, %v74
    %v76 = vlaneseq
    %v77 = vshrl.u32 %v76, 7
    %v78 = vsub.s32 0, %v77
    %v79 = vrot.slane %v71, %v78
    %v82 = vmul.f32 %v75, %v45
    %v83 = vmul.f32 %v79, %v45
    %vm84 = vcmask 257024
    %v85 = vsel %vm84, %v82, 0.0
    %86 = vadd.xlane.f32.xlu0 %v85
    %v87 = vpop.xlane.xlu0 %86
    %v88 = vsel %vm84, %v83, 0.0
    %89 = vadd.xlane.f32.xlu0 %v88
    %v90 = vpop.xlane.xlu0 %89
    %93 = vbcast.lane.b32.xlu0 %v46, 256
    %v94 = vpop.permute.xlu0 %93
    %v96 = vadd.f32 %v87, %v94
    %v97 = vadd.f32 %v90, %v94
    %vm98 = vcmp.ge.f32.partialorder %v96, 0.0
    %vm99 = vcmp.ge.f32.partialorder %v97, 0.0
    %v100 = vmul.f32 %v96, 0.2
    %v101 = vmul.f32 %v97, 0.2
    %v102 = vsel %vm98, %v96, %v100
    %v103 = vsel %vm99, %v97, %v101
    %v104 = vmul.f32 %v102, 1.4142135
    %v105 = vmul.f32 %v103, 1.4142135
    %107 = vrot.lane.b32.xlu0 %v47, 4
    %v108 = vpop.permute.xlu0 %107
    %112 = vset.pattern.permute.xlu0 0
    %113 = vperm.xlu0 %112, %v104
    %v114 = vpop.permute.xlu0 %113
    %115 = vset.pattern.permute.xlu0 0
    %116 = vperm.xlu0 %115, %v105
    %v117 = vpop.permute.xlu0 %116
    %v118 = vlaneseq
    %v119 = vand.u32 %v118, 127
    %v120 = vadd.s32 %v119, 4294967284
    %v121 = vlaneseq
    %v122 = vshrl.u32 %v121, 7
    %v123 = vsub.s32 %v120, %v122
    %v124 = vrot.slane %v114, %v123
    %v125 = vlaneseq
    %v126 = vshrl.u32 %v125, 7
    %v127 = vsub.s32 %v120, %v126
    %v128 = vrot.slane %v117, %v127
    %vm129 = vcmask 1041409
    %v130 = vsel %vm129, %v128, %v124
    %vm132 = vcmask 31744
    %v133 = vsel %vm132, 0.0, %v108
    %vm134 = vcmask 97280
    %v135 = vsel %vm134, %v133, %v130
    %v136 = vlaneseq
    %v137 = vshrl.u32 %v136, 7
    %v138 = vsub.s32 0, %v137
    %v139 = vrot.slane %v135, %v138
    %141 = vbcast.lane.b32.xlu0 %v139, 256
    %v142 = vpop.permute.xlu0 %141
    %s144 = sor.u32 256, 8
    %145 = vbcast.lane.b32.xlu0 %v139, %s144
    %v146 = vpop.permute.xlu0 %145
    %v147 = vlaneseq
    %v148 = vshrl.u32 %v147, 7
    %v149 = vsub.s32 1, %v148
    %v150 = vrot.slane %v135, %v149
    %152 = vbcast.lane.b32.xlu0 %v150, 256
    %v153 = vpop.permute.xlu0 %152
    %s155 = sor.u32 256, 8
    %156 = vbcast.lane.b32.xlu0 %v150, %s155
    %v157 = vpop.permute.xlu0 %156
    %v158 = vadd.f32 %v142, %v41
    %v159 = vadd.f32 %v142, %v42
    %v160 = vadd.f32 %v146, %v43
    %v161 = vadd.f32 %v146, %v44
    %v162 = vadd.f32 %v153, %v41
    %v163 = vadd.f32 %v153, %v42
    %v164 = vadd.f32 %v157, %v43
    %v165 = vadd.f32 %v157, %v44
    %166 = vst [vmem:[#allocation7] sm:$0xff] %v158
    %167 = vst [vmem:[#allocation7 + $0x8] sm:$0xff] %v159
    %168 = vst [vmem:[#allocation7 + $0x10] sm:$0xff] %v160
    %169 = vst [vmem:[#allocation7 + $0x18] sm:$0xff] %v161
    %170 = vst [vmem:[#allocation7 + $0x20] sm:$0xff] %v162
    %171 = vst [vmem:[#allocation7 + $0x28] sm:$0xff] %v163
    %172 = vst [vmem:[#allocation7 + $0x30] sm:$0xff] %v164
    %173 = vst [vmem:[#allocation7 + $0x38] sm:$0xff] %v165
    // Predicated region
    $region22: #{tpu_custom_call.1} parent=1 // pred_check
      _
    $region23: #{tpu_custom_call.1} parent=1 // pred_check_branch
      %175 = sbr.rel (0) target = $region25
    $region24: #{tpu_custom_call.1} parent=1 // pred_region
      %s177 = ssub.s32 1024, 1024
      %178 = vsyncadd [#allocation4], %s177
      %s179 = sshll.u32 [#allocation7], 4
      %s180 = int_to_ptr.vmem [resolvable:$true] %s179
      %185 = dma.vmem_to_hbm [thread:$0]  %s180, 1024, %s3, [#allocation4], 256, 256, 16
    $region25: #{tpu_custom_call.1} parent=1 // pred_fallthru
      _
    // Predicated region
    $region26: #{tpu_custom_call.1} parent=1 // pred_check
      _
    $region27: #{tpu_custom_call.1} parent=1 // pred_check_branch
      %187 = sbr.rel (0) target = $region29
    $region28: #{tpu_custom_call.1} parent=1 // pred_region
      %188 = dma.done [#allocation4], 1024
    $region29: #{tpu_custom_call.1} parent=1 // pred_fallthru
      _
    %189 = vsyncpa [#allocation3], 1
    %190 = vsyncpa [#allocation6], 1
    %191 = vsyncpa [#allocation4], 1

</llo_original>
